<compile_context>
chip_gen: v5e
topology: v5e:2x2
jax: 0.10.0
libtpu: 0.0.40
codegen_flags: <defaults>
</compile_context>

<pallas_src>
import functools

import jax
import jax.numpy as jnp
from jax.experimental import pallas as pl
from jax.experimental.pallas import tpu as pltpu


def _round_up(x, m):
    return ((x + m - 1) // m) * m


def _vmem_capacity_bytes():
    """Generation-aware VMEM capacity; falls back to the smallest (v7x)."""
    try:
        info = pltpu.get_tpu_info()
        cap = getattr(info, "vmem_capacity_bytes", None)
        if cap:
            return int(cap)
    except Exception:
        pass
    return 64 * 1024 * 1024


def _hardswish(y):
    # hardswish(y) = y * relu6(y + 3) / 6
    return y * jnp.clip(y + 3.0, 0.0, 6.0) * (1.0 / 6.0)


def _conv3x3_stacked_kernel(x_ref, w_ref, b_ref, o_ref, acc_ref, stk_ref, *,
                            cin_p, wp, l_out_pad, l_stk):
    """stride=1 path: build a (3*Cin, l_stk) dx-stack, then 3 dots with K=3*Cin.

    x_ref : (cin_p, l_in)           zero-padded, flattened NCHW image
    w_ref : (3, cout_tile, 3*cin_p) taps, BN scale folded; [dy, o, dx*cin_p+ci]
    b_ref : (cout_tile, 1)          folded BN bias (f32)
    o_ref : (cout_tile, l_out_pad)  flattened output (row pitch wp)
    acc_ref: (cout_tile, l_out_pad) f32 VMEM accumulator
    stk_ref: (3*cin_p, l_stk)       dx-stacked input (VMEM scratch)
    """
    # Stack the three dx-shifted copies along the contraction (sublane) axis.
    # These are the only lane-misaligned copies; the dy offsets below are
    # whole-vreg offsets whenever wp % 128 == 0.
    for dx in range(3):
        stk_ref[pl.ds(dx * cin_p, cin_p), :] = x_ref[:, pl.ds(dx, l_stk)]
    # Three MXU dots with K = 3*Cin, accumulated in VMEM scratch (f32).
    for dy in range(3):
        contrib = jnp.dot(w_ref[dy], stk_ref[:, pl.ds(dy * wp, l_out_pad)],
                          preferred_element_type=jnp.float32)
        if dy == 0:
            acc_ref[...] = contrib
        else:
            acc_ref[...] += contrib
    y = acc_ref[...] + b_ref[...]                 # folded BN bias
    o_ref[...] = _hardswish(y).astype(o_ref.dtype)


def _conv3x3_prestacked_kernel(x_ref, w_ref, b_ref, o_ref):
    """stride>=2 path: wrapper-built 9*Cin im2col stack, single K=9*Cin dot.

    x_ref : (9*cin_p, l_out_pad)    strided im2col stack
    w_ref : (1, cout_tile, 9*cin_p) taps [0, o, (dy*3+dx)*cin_p + ci]
    """
    y = jnp.dot(w_ref[0], x_ref[...], preferred_element_type=jnp.float32)
    y = y + b_ref[...]
    o_ref[...] = _hardswish(y).astype(o_ref.dtype)


@functools.partial(jax.jit,
                   static_argnames=("stride", "eps", "compute_dtype", "out_dtype"))
def conv3x3_bn_hswish(x_nchw, weight, gamma, beta, running_mean, running_var,
                      stride=1, eps=1e-5, compute_dtype=jnp.float32,
                      out_dtype=jnp.float32):
    """Fused Conv2d(3x3, pad=1, bias=False, groups=1) + BatchNorm2d(eval) + Hardswish.

    x_nchw: (N, Cin, H, W) float32
    weight: (Cout, Cin, 3, 3) float32 (nn.Conv2d weight, OIHW)
    """
    n, cin, h, w = x_nchw.shape
    cout, cin_w, kh, kw = weight.shape
    assert (cin_w, kh, kw) == (cin, 3, 3), weight.shape
    s = int(stride)
    # TODO(synk): groups > 1 not implemented (module default is groups=1).
    # TODO(synk): BatchNorm uses running stats (inference); training-mode batch
    # statistics are not implemented.
    # TODO(synk): very large images on v7x (64 MiB VMEM) would additionally need
    # an H-tiled grid with a 2-row halo; one image per grid step is used here.

    itemsize = jnp.dtype(compute_dtype).itemsize
    sublane = {4: 8, 2: 16, 1: 32}[itemsize]
    cin_p = _round_up(cin, sublane)              # sublane / MXU-row occupancy
    cout_p = _round_up(cout, 8)

    # ---- Fold BatchNorm (inference) into conv weight + bias ----------------
    scale = (gamma / jnp.sqrt(running_var + eps)).astype(jnp.float32)
    bias = (beta - running_mean * scale).astype(jnp.float32)
    w_f = weight.astype(jnp.float32) * scale[:, None, None, None]        # OIHW
    w_f = jnp.pad(w_f, ((0, cout_p - cout), (0, cin_p - cin), (0, 0), (0, 0)))
    bias_p = jnp.pad(bias, (0, cout_p - cout)).reshape(cout_p, 1)

    h_out = (h - 1) // s + 1
    w_out = (w - 1) // s + 1

    # ---- Cout tiling: 2nd parallel grid axis + smaller output buffers ------
    if cout_p > 128 and cout_p % 128 == 0:
        cout_tile = 128
    else:
        cout_tile = cout_p
    n_ct = cout_p // cout_tile

    if s == 1:
        # Row pitch: lane-align (multiple of 128) when it costs <= 25% extra
        # lanes; always lane-align the flat output length.
        wp_aligned = _round_up(w + 2, 128)
        wp = wp_aligned if wp_aligned <= int(1.25 * (w + 2)) else (w + 2)
        l_out = h * wp
        l_out_pad = _round_up(l_out, 128)
        l_stk = l_out_pad + 2 * wp               # stack length (covers dy shifts)
        l_in = l_stk + 2                         # input length (covers dx shifts)

        x_p = jnp.pad(x_nchw, ((0, 0), (0, cin_p - cin), (1, 1), (1, wp - w - 1)))
        x_flat = x_p.reshape(n, cin_p, (h + 2) * wp).astype(compute_dtype)
        x_flat = jnp.pad(x_flat, ((0, 0), (0, 0), (0, l_in - (h + 2) * wp)))

        # w_taps[dy, o, dx*cin_p + ci] = w_f[o, ci, dy, dx]
        w_taps = jnp.transpose(w_f, (2, 0, 3, 1)).reshape(3, cout_p, 3 * cin_p)
        w_taps = w_taps.astype(compute_dtype)

        n_taps, k_dim = 3, 3 * cin_p
        kernel = functools.partial(_conv3x3_stacked_kernel, cin_p=cin_p, wp=wp,
                                   l_out_pad=l_out_pad, l_stk=l_stk)
        scratch_shapes = [pltpu.VMEM((cout_tile, l_out_pad), jnp.float32),
                          pltpu.VMEM((3 * cin_p, l_stk), compute_dtype)]
        scratch_bytes = cout_tile * l_out_pad * 4 + 3 * cin_p * l_stk * itemsize
    else:
        # stride >= 2: build the strided im2col stack in the wrapper so the
        # kernel computes ONLY the required output rows/cols (single K=9*Cin
        # dot, dense output layout, no post-kernel strided crop).
        x_p = jnp.pad(x_nchw, ((0, 0), (0, cin_p - cin), (1, 1), (1, 1)))
        planes = []
        for dy in range(3):
            for dx in range(3):
                planes.append(
                    x_p[:, :, dy:dy + s * (h_out - 1) + 1:s,
                              dx:dx + s * (w_out - 1) + 1:s])
        xs = jnp.stack(planes, axis=1)                   # (n, 9, cin_p, ho, wo)
        l_out = h_out * w_out
        l_out_pad = _round_up(l_out, 128)
        x_flat = xs.reshape(n, 9 * cin_p, l_out).astype(compute_dtype)
        x_flat = jnp.pad(x_flat, ((0, 0), (0, 0), (0, l_out_pad - l_out)))
        l_in = l_out_pad
        wp = w_out  # unused on this path (output is already dense)

        # w_taps[0, o, (dy*3+dx)*cin_p + ci] = w_f[o, ci, dy, dx]
        w_taps = jnp.transpose(w_f, (0, 2, 3, 1)).reshape(1, cout_p, 9 * cin_p)
        w_taps = w_taps.astype(compute_dtype)

        n_taps, k_dim = 1, 9 * cin_p
        kernel = _conv3x3_prestacked_kernel
        scratch_shapes = []
        scratch_bytes = 0

    # ---- VMEM budget (generation aware) -------------------------------------
    out_itemsize = jnp.dtype(out_dtype).itemsize
    vmem_need = (2 * x_flat.shape[1] * l_in * itemsize          # input (2-buf)
                 + 2 * n_taps * cout_tile * k_dim * itemsize    # weights (2-buf)
                 + 2 * cout_tile * l_out_pad * out_itemsize     # output (2-buf)
                 + scratch_bytes
                 + 2 * k_dim * l_out_pad * itemsize)            # relayout slack
    cap = _vmem_capacity_bytes()
    vmem_limit = int(min(max(int(1.3 * vmem_need), 32 * 1024 * 1024),
                         int(0.8 * cap)))

    flops = 2 * n * cout_p * 9 * cin_p * l_out_pad
    bytes_accessed = (x_flat.size * itemsize + w_taps.size * itemsize
                      + bias_p.size * 4 + n * cout_p * l_out_pad * out_itemsize)

    out_flat = pl.pallas_call(
        kernel,
        out_shape=jax.ShapeDtypeStruct((n, cout_p, l_out_pad), out_dtype),
        grid_spec=pltpu.PrefetchScalarGridSpec(
            num_scalar_prefetch=0,
            grid=(n, n_ct),
            in_specs=[
                pl.BlockSpec((None, x_flat.shape[1], l_in), lambda i, j: (i, 0, 0)),
                pl.BlockSpec((n_taps, cout_tile, k_dim), lambda i, j: (0, j, 0)),
                pl.BlockSpec((cout_tile, 1), lambda i, j: (j, 0)),
            ],
            out_specs=pl.BlockSpec((None, cout_tile, l_out_pad),
                                   lambda i, j: (i, j, 0)),
            scratch_shapes=scratch_shapes),
        compiler_params=pltpu.CompilerParams(
            dimension_semantics=("parallel", "parallel"),
            vmem_limit_bytes=vmem_limit),
        cost_estimate=pl.CostEstimate(flops=flops, transcendentals=0,
                                      bytes_accessed=bytes_accessed),
    )(x_flat, w_taps, bias_p)

    if s == 1:
        # Drop the (wp - w) junk columns per row and any channel / lane padding.
        out = out_flat[:, :cout, :h * wp].reshape(n, cout, h, wp)[:, :, :, :w]
    else:
        out = out_flat[:, :cout, :l_out].reshape(n, cout, h_out, w_out)
    return out


def _reference(x, weight, gamma, beta, running_mean, running_var,
               stride=1, eps=1e-5):
    y = jax.lax.conv_general_dilated(
        x, weight, window_strides=(stride, stride),
        padding=((1, 1), (1, 1)),
        dimension_numbers=("NCHW", "OIHW", "NCHW"))
    scale = gamma / jnp.sqrt(running_var + eps)
    bias = beta - running_mean * scale
    y = y * scale[None, :, None, None] + bias[None, :, None, None]
    return y * jnp.clip(y + 3.0, 0.0, 6.0) / 6.0


if __name__ == "__main__":
    key = jax.random.PRNGKey(0)
    k1, k2, k3, k4, k5, k6 = jax.random.split(key, 6)

    # Small shapes consistent with the module: N=2, Cin=4, Cout=8, H=W=16.
    N, Cin, Cout, H, W = 2, 4, 8, 16, 16

    x = jax.random.normal(k1, (N, Cin, H, W), dtype=jnp.float32)
    weight = jax.random.normal(k2, (Cout, Cin, 3, 3), dtype=jnp.float32) * 0.1
    gamma = jax.random.uniform(k3, (Cout,), minval=0.5, maxval=1.5)
    beta = jax.random.normal(k4, (Cout,)) * 0.1
    running_mean = jax.random.normal(k5, (Cout,)) * 0.1
    running_var = jax.random.uniform(k6, (Cout,), minval=0.5, maxval=1.5)

    ref = _reference(x, weight, gamma, beta, running_mean, running_var, stride=1)

    # float32 compute, stride=1 (in-kernel dx-stack, 3 dots with K=3*Cin)
    out = conv3x3_bn_hswish(x, weight, gamma, beta, running_mean, running_var,
                            stride=1)
    jax.block_until_ready(out)
    assert out.shape == (N, Cout, H, W), out.shape
    err = float(jnp.max(jnp.abs(out - ref)))
    assert err < 3e-2, err

    # stride=2 (wrapper im2col, single K=9*Cin dot, only needed outputs computed)
    ref_s2 = _reference(x, weight, gamma, beta, running_mean, running_var,
                        stride=2)
    out_s2 = conv3x3_bn_hswish(x, weight, gamma, beta, running_mean,
                               running_var, stride=2)
    jax.block_until_ready(out_s2)
    assert out_s2.shape == ref_s2.shape, (out_s2.shape, ref_s2.shape)
    err_s2 = float(jnp.max(jnp.abs(out_s2 - ref_s2)))
    assert err_s2 < 3e-2, err_s2

    # bfloat16 compute (f32 MXU accumulation), f32 output.
    out_bf16 = conv3x3_bn_hswish(x, weight, gamma, beta, running_mean,
                                 running_var, stride=1,
                                 compute_dtype=jnp.bfloat16)
    jax.block_until_ready(out_bf16)
    err_bf16 = float(jnp.max(jnp.abs(out_bf16 - ref)))
    assert err_bf16 < 6e-2, err_bf16

    # bfloat16 compute AND bfloat16 output (halves output HBM traffic).
    out_bf16o = conv3x3_bn_hswish(x, weight, gamma, beta, running_mean,
                                  running_var, stride=1,
                                  compute_dtype=jnp.bfloat16,
                                  out_dtype=jnp.bfloat16)
    jax.block_until_ready(out_bf16o)
    err_bf16o = float(jnp.max(jnp.abs(out_bf16o.astype(jnp.float32) - ref)))
    assert err_bf16o < 2e-1, err_bf16o

    print("KERNEL_OK")
</pallas_src>

<mosaic_0001>
module attributes {stable_mosaic.version = 11 : i64} {
  func.func @_conv3x3_stacked_kernel(%arg0: i32, %arg1: i32, %arg2: memref<1x8x422xf32, #tpu.memory_space<vmem>>, %arg3: memref<3x8x24xf32, #tpu.memory_space<vmem>>, %arg4: memref<8x1xf32, #tpu.memory_space<vmem>>, %arg5: memref<1x8x384xf32, #tpu.memory_space<vmem>>, %arg6: memref<8x384xf32, #tpu.memory_space<vmem>>, %arg7: memref<24x420xf32, #tpu.memory_space<vmem>>) attributes {dimension_semantics = [#tpu.dimension_semantics<parallel>, #tpu.dimension_semantics<parallel>], iteration_bounds = array<i64: 2, 1>, scalar_prefetch = 0 : i64, scratch_operands = 2 : i64, tpu.core_type = #tpu.core_type<tc>, window_params = [{transform_indices = @transform_0, window_bounds = array<i64: 1, 8, 422>}, {transform_indices = @transform_1, window_bounds = array<i64: 3, 8, 24>}, {transform_indices = @transform_2, window_bounds = array<i64: 8, 1>}, {transform_indices = @transform_3, window_bounds = array<i64: 1, 8, 384>}]} {
    %c0 = arith.constant 0 : index
    %c0_0 = arith.constant 0 : index
    %c0_1 = arith.constant 0 : index
    %0 = vector.load %arg2[%c0, %c0_0, %c0_1] : memref<1x8x422xf32, #tpu.memory_space<vmem>>, vector<1x8x420xf32>
    %1 = vector.shape_cast %0 : vector<1x8x420xf32> to vector<8x420xf32>
    %c0_2 = arith.constant 0 : index
    %c0_3 = arith.constant 0 : index
    %2 = vector.load %arg7[%c0_2, %c0_3] : memref<24x420xf32, #tpu.memory_space<vmem>>, vector<8x420xf32>
    tpu.vector_store %arg7[%c0_2, %c0_3], %1 {strides = array<i32>} : memref<24x420xf32, #tpu.memory_space<vmem>>, vector<8x420xf32>,
    %c0_4 = arith.constant 0 : index
    %c0_5 = arith.constant 0 : index
    %c1 = arith.constant 1 : index
    %3 = vector.load %arg2[%c0_4, %c0_5, %c1] : memref<1x8x422xf32, #tpu.memory_space<vmem>>, vector<1x8x420xf32>
    %4 = vector.shape_cast %3 : vector<1x8x420xf32> to vector<8x420xf32>
    %c8 = arith.constant 8 : index
    %c0_6 = arith.constant 0 : index
    %5 = vector.load %arg7[%c8, %c0_6] : memref<24x420xf32, #tpu.memory_space<vmem>>, vector<8x420xf32>
    tpu.vector_store %arg7[%c8, %c0_6], %4 {strides = array<i32>} : memref<24x420xf32, #tpu.memory_space<vmem>>, vector<8x420xf32>,
    %c0_7 = arith.constant 0 : index
    %c0_8 = arith.constant 0 : index
    %c2 = arith.constant 2 : index
    %6 = vector.load %arg2[%c0_7, %c0_8, %c2] : memref<1x8x422xf32, #tpu.memory_space<vmem>>, vector<1x8x420xf32>
    %7 = vector.shape_cast %6 : vector<1x8x420xf32> to vector<8x420xf32>
    %c16 = arith.constant 16 : index
    %c0_9 = arith.constant 0 : index
    %8 = vector.load %arg7[%c16, %c0_9] : memref<24x420xf32, #tpu.memory_space<vmem>>, vector<8x420xf32>
    tpu.vector_store %arg7[%c16, %c0_9], %7 {strides = array<i32>} : memref<24x420xf32, #tpu.memory_space<vmem>>, vector<8x420xf32>,
    %c0_10 = arith.constant 0 : index
    %c0_11 = arith.constant 0 : index
    %c0_12 = arith.constant 0 : index
    %9 = vector.load %arg3[%c0_10, %c0_11, %c0_12] : memref<3x8x24xf32, #tpu.memory_space<vmem>>, vector<1x8x24xf32>
    %10 = vector.shape_cast %9 : vector<1x8x24xf32> to vector<8x24xf32>
    %c0_13 = arith.constant 0 : index
    %c0_14 = arith.constant 0 : index
    %11 = vector.load %arg7[%c0_13, %c0_14] : memref<24x420xf32, #tpu.memory_space<vmem>>, vector<24x384xf32>
    %cst = arith.constant dense<0.000000e+00> : vector<8x384xf32>
    %12 = tpu.matmul %10, %11, %cst {dimension_numbers = #tpu.dot_dimension_numbers<[1], [0], [0], [1], [0, 0, 1, 1], [], []>} : vector<8x24xf32>, vector<24x384xf32>, vector<8x384xf32> -> vector<8x384xf32>
    %c0_15 = arith.constant 0 : index
    %c0_16 = arith.constant 0 : index
    %13 = vector.load %arg6[%c0_15, %c0_16] : memref<8x384xf32, #tpu.memory_space<vmem>>, vector<8x384xf32>
    tpu.vector_store %arg6[%c0_15, %c0_16], %12 {strides = array<i32>} : memref<8x384xf32, #tpu.memory_space<vmem>>, vector<8x384xf32>,
    %c1_17 = arith.constant 1 : index
    %c0_18 = arith.constant 0 : index
    %c0_19 = arith.constant 0 : index
    %14 = vector.load %arg3[%c1_17, %c0_18, %c0_19] : memref<3x8x24xf32, #tpu.memory_space<vmem>>, vector<1x8x24xf32>
    %15 = vector.shape_cast %14 : vector<1x8x24xf32> to vector<8x24xf32>
    %c0_20 = arith.constant 0 : index
    %c18 = arith.constant 18 : index
    %16 = vector.load %arg7[%c0_20, %c18] : memref<24x420xf32, #tpu.memory_space<vmem>>, vector<24x384xf32>
    %cst_21 = arith.constant dense<0.000000e+00> : vector<8x384xf32>
    %17 = tpu.matmul %15, %16, %cst_21 {dimension_numbers = #tpu.dot_dimension_numbers<[1], [0], [0], [1], [0, 0, 1, 1], [], []>} : vector<8x24xf32>, vector<24x384xf32>, vector<8x384xf32> -> vector<8x384xf32>
    %c0_22 = arith.constant 0 : index
    %c0_23 = arith.constant 0 : index
    %18 = vector.load %arg6[%c0_22, %c0_23] : memref<8x384xf32, #tpu.memory_space<vmem>>, vector<8x384xf32>
    %19 = arith.addf %18, %17 : vector<8x384xf32>
    %c0_24 = arith.constant 0 : index
    %c0_25 = arith.constant 0 : index
    %20 = vector.load %arg6[%c0_24, %c0_25] : memref<8x384xf32, #tpu.memory_space<vmem>>, vector<8x384xf32>
    tpu.vector_store %arg6[%c0_24, %c0_25], %19 {strides = array<i32>} : memref<8x384xf32, #tpu.memory_space<vmem>>, vector<8x384xf32>,
    %c2_26 = arith.constant 2 : index
    %c0_27 = arith.constant 0 : index
    %c0_28 = arith.constant 0 : index
    %21 = vector.load %arg3[%c2_26, %c0_27, %c0_28] : memref<3x8x24xf32, #tpu.memory_space<vmem>>, vector<1x8x24xf32>
    %22 = vector.shape_cast %21 : vector<1x8x24xf32> to vector<8x24xf32>
    %c0_29 = arith.constant 0 : index
    %c36 = arith.constant 36 : index
    %23 = vector.load %arg7[%c0_29, %c36] : memref<24x420xf32, #tpu.memory_space<vmem>>, vector<24x384xf32>
    %cst_30 = arith.constant dense<0.000000e+00> : vector<8x384xf32>
    %24 = tpu.matmul %22, %23, %cst_30 {dimension_numbers = #tpu.dot_dimension_numbers<[1], [0], [0], [1], [0, 0, 1, 1], [], []>} : vector<8x24xf32>, vector<24x384xf32>, vector<8x384xf32> -> vector<8x384xf32>
    %c0_31 = arith.constant 0 : index
    %c0_32 = arith.constant 0 : index
    %25 = vector.load %arg6[%c0_31, %c0_32] : memref<8x384xf32, #tpu.memory_space<vmem>>, vector<8x384xf32>
    %26 = arith.addf %25, %24 : vector<8x384xf32>
    %c0_33 = arith.constant 0 : index
    %c0_34 = arith.constant 0 : index
    %27 = vector.load %arg6[%c0_33, %c0_34] : memref<8x384xf32, #tpu.memory_space<vmem>>, vector<8x384xf32>
    tpu.vector_store %arg6[%c0_33, %c0_34], %26 {strides = array<i32>} : memref<8x384xf32, #tpu.memory_space<vmem>>, vector<8x384xf32>,
    %c0_35 = arith.constant 0 : index
    %c0_36 = arith.constant 0 : index
    %28 = vector.load %arg6[%c0_35, %c0_36] : memref<8x384xf32, #tpu.memory_space<vmem>>, vector<8x384xf32>
    %c0_37 = arith.constant 0 : index
    %c0_38 = arith.constant 0 : index
    %29 = vector.load %arg4[%c0_37, %c0_38] : memref<8x1xf32, #tpu.memory_space<vmem>>, vector<8x1xf32>
    %30 = vector.broadcast %29 : vector<8x1xf32> to vector<8x384xf32>
    %31 = arith.addf %28, %30 : vector<8x384xf32>
    %cst_39 = arith.constant 3.000000e+00 : f32
    %32 = vector.broadcast %cst_39 : f32 to vector<8x384xf32>
    %33 = arith.addf %31, %32 : vector<8x384xf32>
    %cst_40 = arith.constant 0.000000e+00 : f32
    %cst_41 = arith.constant 6.000000e+00 : f32
    %34 = vector.broadcast %cst_40 : f32 to vector<8x384xf32>
    %35 = arith.maximumf %34, %33 : vector<8x384xf32>
    %36 = vector.broadcast %cst_41 : f32 to vector<8x384xf32>
    %37 = arith.minimumf %36, %35 : vector<8x384xf32>
    %38 = arith.mulf %31, %37 : vector<8x384xf32>
    %cst_42 = arith.constant 0.166666672 : f32
    %39 = vector.broadcast %cst_42 : f32 to vector<8x384xf32>
    %40 = arith.mulf %38, %39 : vector<8x384xf32>
    %c0_43 = arith.constant 0 : index
    %c0_44 = arith.constant 0 : index
    %c0_45 = arith.constant 0 : index
    %41 = vector.load %arg5[%c0_43, %c0_44, %c0_45] : memref<1x8x384xf32, #tpu.memory_space<vmem>>, vector<1x8x384xf32>
    %42 = vector.shape_cast %41 : vector<1x8x384xf32> to vector<8x384xf32>
    %43 = vector.shape_cast %40 : vector<8x384xf32> to vector<1x8x384xf32>
    tpu.vector_store %arg5[%c0_43, %c0_44, %c0_45], %43 {strides = array<i32>} : memref<1x8x384xf32, #tpu.memory_space<vmem>>, vector<1x8x384xf32>,
    return
  }
  func.func @transform_0(%arg0: i32, %arg1: i32) -> (i32, i32, i32) {
    %c0_i32 = arith.constant 0 : i32
    %c0_i32_0 = arith.constant 0 : i32
    %c0_i32_1 = arith.constant 0 : i32
    return %arg0, %c0_i32, %c0_i32_0 : i32, i32, i32
  }
  func.func @transform_1(%arg0: i32, %arg1: i32) -> (i32, i32, i32) {
    %c0_i32 = arith.constant 0 : i32
    %c0_i32_0 = arith.constant 0 : i32
    %c0_i32_1 = arith.constant 0 : i32
    return %c0_i32, %arg1, %c0_i32_0 : i32, i32, i32
  }
  func.func @transform_2(%arg0: i32, %arg1: i32) -> (i32, i32) {
    %c0_i32 = arith.constant 0 : i32
    %c0_i32_0 = arith.constant 0 : i32
    return %arg1, %c0_i32 : i32, i32
  }
  func.func @transform_3(%arg0: i32, %arg1: i32) -> (i32, i32, i32) {
    %c0_i32 = arith.constant 0 : i32
    %c0_i32_0 = arith.constant 0 : i32
    return %arg0, %arg1, %c0_i32 : i32, i32, i32
  }
}

</mosaic_0001>

<llo_original>
// kernel: conv3x3_bn_hswish.1
$region0: #{conv3x3_bn_hswish.1}
  #allocation0 [shape = 'u32[]', space=smem, size = 0x4, offset = 0x4, fixed_abs, tag = 'smem constant byte address 0x4 - core index']
  #allocation1 [shape = 'u32[72,128]{1,0:T(1,128)}', space=vmem, size = 0x9000, scoped, tag = 'internal scratch']
  #allocation2 [shape = 'f32[8,384]{1,0:T(8,128)}', space=vmem, size = 0x3000, scoped, tag = 'scratch operand']
  #allocation3 [shape = 'f32[24,420]{1,0:T(8,128)}', space=vmem, size = 0xc000, scoped, tag = 'scratch operand']
  %s0 = inlined_call_operand.vmem [shape: f32[2,8,422], index: 0, kind: input, shape index: {}]
  %s1 = inlined_call_operand.vmem [shape: f32[3,8,24], index: 1, kind: input, shape index: {}]
  %s2 = inlined_call_operand.vmem [shape: f32[8,1], index: 2, kind: input, shape index: {}]
  %s3 = inlined_call_operand.vmem [shape: f32[2,8,384], index: 3, kind: output, shape index: {}]
  %s4 = sld [smem:[#allocation0]]
  $region45: #{conv3x3_bn_hswish.1} parent=0
    _
  %s6 = ssub.s32 1, %s4
  %s7 = scalar_select 0, %s6, %s4
  loop: start=0, step=1, limit=4
  $region2: #{conv3x3_bn_hswish.1} parent=0 // loop_pre_header
    _
  $region3: #{conv3x3_bn_hswish.1} parent=0 // loop_header
    %s9 = sphi 0, %s13
    %p10 = scmp.ge.s32.totalorder %s9, 4
    %s16 = sphi 0, %s28
    %s17 = sphi 0, %s24
    %s18 = sphi 0, %s16
    %s19 = sphi 0, %s17
    %s20 = sphi 0, %s18
    %s21 = sphi 0, %s19
    %s31 = sphi 0, %s33
    %s34 = sphi 0, %s31
    %s35 = sphi 0, %s34
    %s51 = sphi 0, %s35
    %s57 = sphi 0, %s59
    %s60 = sphi 0, %s57
    %s61 = sphi 0, %s60
    %s77 = sphi 0, %s61
    %s83 = sphi 0, %s85
    %s86 = sphi 0, %s83
    %s87 = sphi 0, %s86
    %s103 = sphi 0, %s87
    %s111 = sphi 0, %s113
    %s114 = sphi 0, %s111
    %s115 = sphi 0, %s114
    %s131 = sphi 0, %s115
  $region4: #{conv3x3_bn_hswish.1} parent=0 // loop_header_branch
    %12 = sbr.rel (%p10) target = $region8
  $region5: #{conv3x3_bn_hswish.1} parent=0 // loop_body
    %s14 = ssub.s32 %s9, 1
    %s15 = ssub.s32 %s9, 2
    %s22 = sadd.s32 1, %s17
    %p23 = scmp.ge.s32.totalorder %s22, 1
    %s24 = scalar_select %p23, 0, %s22
    %s25 = sadd.s32 1, %s16
    %s26 = scalar_select %p23, %s25, %s16
    %p27 = scmp.ge.s32.totalorder %s26, 2
    %s28 = scalar_select %p27, 0, %s26
    %s29 = ssub.s32 %s16, %s28
    %p30 = scmp.eq.s32.totalorder %s29, 0
    %s32 = sadd.s32 %s31, 1
    %s33 = scalar_select %p30, %s31, %s32
    %p36 = pneg %p30
    %p37 = scmp.eq.s32.totalorder %s9, 1
    %p38 = por %p36, %p37
    %p39 = scmp.ne.s32.totalorder %s31, %s34
    %p40 = scmp.eq.s32.totalorder %s9, 0
    %p41 = por %p39, %p40
    %p42 = scmp.ne.s32.totalorder %s31, %s34
    %p43 = scmp.eq.s32.totalorder %s14, 1
    %p44 = por %p42, %p43
    %p45 = scmp.ne.s32.totalorder %s34, %s35
    %p46 = scmp.eq.s32.totalorder %s14, 0
    %p47 = por %p45, %p46
    %p48 = scmp.ne.s32.totalorder %s34, %s35
    %p49 = scmp.eq.s32.totalorder %s15, 1
    %p50 = por %p48, %p49
    %p52 = scmp.ne.s32.totalorder %s35, %s51
    %p53 = scmp.eq.s32.totalorder %s15, 0
    %p54 = por %p52, %p53
    %s55 = ssub.s32 %s17, %s24
    %p56 = scmp.eq.s32.totalorder %s55, 0
    %s58 = sadd.s32 %s57, 1
    %s59 = scalar_select %p56, %s57, %s58
    %p62 = pneg %p56
    %p63 = scmp.eq.s32.totalorder %s9, 1
    %p64 = por %p62, %p63
    %p65 = scmp.ne.s32.totalorder %s57, %s60
    %p66 = scmp.eq.s32.totalorder %s9, 0
    %p67 = por %p65, %p66
    %p68 = scmp.ne.s32.totalorder %s57, %s60
    %p69 = scmp.eq.s32.totalorder %s14, 1
    %p70 = por %p68, %p69
    %p71 = scmp.ne.s32.totalorder %s60, %s61
    %p72 = scmp.eq.s32.totalorder %s14, 0
    %p73 = por %p71, %p72
    %p74 = scmp.ne.s32.totalorder %s60, %s61
    %p75 = scmp.eq.s32.totalorder %s15, 1
    %p76 = por %p74, %p75
    %p78 = scmp.ne.s32.totalorder %s61, %s77
    %p79 = scmp.eq.s32.totalorder %s15, 0
    %p80 = por %p78, %p79
    %s81 = ssub.s32 %s17, %s24
    %p82 = scmp.eq.s32.totalorder %s81, 0
    %s84 = sadd.s32 %s83, 1
    %s85 = scalar_select %p82, %s83, %s84
    %p88 = pneg %p82
    %p89 = scmp.eq.s32.totalorder %s9, 1
    %p90 = por %p88, %p89
    %p91 = scmp.ne.s32.totalorder %s83, %s86
    %p92 = scmp.eq.s32.totalorder %s9, 0
    %p93 = por %p91, %p92
    %p94 = scmp.ne.s32.totalorder %s83, %s86
    %p95 = scmp.eq.s32.totalorder %s14, 1
    %p96 = por %p94, %p95
    %p97 = scmp.ne.s32.totalorder %s86, %s87
    %p98 = scmp.eq.s32.totalorder %s14, 0
    %p99 = por %p97, %p98
    %p100 = scmp.ne.s32.totalorder %s86, %s87
    %p101 = scmp.eq.s32.totalorder %s15, 1
    %p102 = por %p100, %p101
    %p104 = scmp.ne.s32.totalorder %s87, %s103
    %p105 = scmp.eq.s32.totalorder %s15, 0
    %p106 = por %p104, %p105
    %s107 = ssub.s32 %s16, %s28
    %s108 = ssub.s32 %s17, %s24
    %s109 = sor.u32 %s107, %s108
    %p110 = scmp.eq.s32.totalorder %s109, 0
    %s112 = sadd.s32 %s111, 1
    %s113 = scalar_select %p110, %s111, %s112
    %p116 = pneg %p110
    %p117 = scmp.eq.s32.totalorder %s9, 1
    %p118 = por %p116, %p117
    %p119 = scmp.ne.s32.totalorder %s111, %s114
    %p120 = scmp.eq.s32.totalorder %s9, 0
    %p121 = por %p119, %p120
    %p122 = scmp.ne.s32.totalorder %s111, %s114
    %p123 = scmp.eq.s32.totalorder %s14, 1
    %p124 = por %p122, %p123
    %p125 = scmp.ne.s32.totalorder %s114, %s115
    %p126 = scmp.eq.s32.totalorder %s14, 0
    %p127 = por %p125, %p126
    %p128 = scmp.ne.s32.totalorder %s114, %s115
    %p129 = scmp.eq.s32.totalorder %s15, 1
    %p130 = por %p128, %p129
    %p132 = scmp.ne.s32.totalorder %s115, %s131
    %p133 = scmp.eq.s32.totalorder %s15, 0
    %p134 = por %p132, %p133
    %p135 = scmp.le.s32.totalorder 1, %s9
    %p136 = scmp.lt.s32.totalorder %s9, 3
    %p137 = pnand %p135, %p136
    %p138 = pneg %p137
    // Predicated region
    $region9: #{conv3x3_bn_hswish.1} parent=5 // pred_check
      _
    $region10: #{conv3x3_bn_hswish.1} parent=5 // pred_check_branch
      %140 = sbr.rel (%p137) target = $region12
    $region11: #{conv3x3_bn_hswish.1} parent=5 // pred_region
      %s141 = ssub.s32 %s9, 1
      // Predicated region
      $region13: #{conv3x3_bn_hswish.1} parent=11 // pred_check
        %p142 = pneg %p73
      $region14: #{conv3x3_bn_hswish.1} parent=11 // pred_check_branch
        %144 = sbr.rel (%p142) target = $region16
      $region15: #{conv3x3_bn_hswish.1} parent=11 // pred_region
        %p145 = scmp.lt.s32.totalorder %s19, 0
        %s146 = scalar_select %p145, %s19, 0
        %s147 = smul.addr %s146, 8
        %s148 = scalar_lea.vmem %s1, %s147
      $region16: #{conv3x3_bn_hswish.1} parent=11 // pred_fallthru
        _
      // Predicated region
      $region17: #{conv3x3_bn_hswish.1} parent=11 // pred_check
        %p149 = pneg %p99
      $region18: #{conv3x3_bn_hswish.1} parent=11 // pred_check_branch
        %151 = sbr.rel (%p149) target = $region20
      $region19: #{conv3x3_bn_hswish.1} parent=11 // pred_region
        %p152 = scmp.lt.s32.totalorder %s19, 0
        %s153 = scalar_select %p152, %s19, 0
        %s154 = smul.addr %s153, 8
        %s155 = scalar_lea.vmem %s2, %s154
      $region20: #{conv3x3_bn_hswish.1} parent=11 // pred_fallthru
        _
    $region12: #{conv3x3_bn_hswish.1} parent=5 // pred_fallthru
      _
    %p156 = scmp.lt.s32.totalorder %s9, 2
    // Predicated region
    $region21: #{conv3x3_bn_hswish.1} parent=5 // pred_check
      %p157 = pneg %p156
    $region22: #{conv3x3_bn_hswish.1} parent=5 // pred_check_branch
      %159 = sbr.rel (%p157) target = $region24
    $region23: #{conv3x3_bn_hswish.1} parent=5 // pred_region
      // Predicated region
      $region25: #{conv3x3_bn_hswish.1} parent=23 // pred_check
        %p160 = pneg %p41
      $region26: #{conv3x3_bn_hswish.1} parent=23 // pred_check_branch
        %162 = sbr.rel (%p160) target = $region28
      $region27: #{conv3x3_bn_hswish.1} parent=23 // pred_region
        %p163 = scmp.lt.s32.totalorder %s16, 1
        %s164 = scalar_select %p163, %s16, 1
        %s165 = smul.addr %s164, 4
        %s166 = smul.addr %s165, 8
        %s167 = scalar_lea.vmem %s0, %s166
      $region28: #{conv3x3_bn_hswish.1} parent=23 // pred_fallthru
        _
    $region24: #{conv3x3_bn_hswish.1} parent=5 // pred_fallthru
      _
    %p168 = scmp.le.s32.totalorder 1, %s9
    %p169 = scmp.lt.s32.totalorder %s9, 3
    %p170 = pnand %p168, %p169
    %p171 = pneg %p170
    // Predicated region
    $region29: #{conv3x3_bn_hswish.1} parent=5 // pred_check
      _
    $region30: #{conv3x3_bn_hswish.1} parent=5 // pred_check_branch
      %173 = sbr.rel (%p170) target = $region32
    $region31: #{conv3x3_bn_hswish.1} parent=5 // pred_region
      %s174 = ssub.s32 %s9, 1
      %p175 = scmp.lt.s32.totalorder %s18, 1
      %s176 = scalar_select %p175, %s18, 1
      %s177 = smul.addr %s176, 4
      %s178 = smul.addr %s177, 8
      %s179 = scalar_lea.vmem %s0, %s178
      %p180 = pneg %p47
      %p181 = pneg %p44
      %p182 = scmp.lt.s32.totalorder %s19, 0
      %s183 = scalar_select %p182, %s19, 0
      %s184 = smul.addr %s183, 8
      %s185 = scalar_lea.vmem %s1, %s184
      %p186 = pneg %p73
      %p187 = pneg %p70
      %p188 = scmp.lt.s32.totalorder %s19, 0
      %s189 = scalar_select %p188, %s19, 0
      %s190 = smul.addr %s189, 8
      %s191 = scalar_lea.vmem %s2, %s190
      %p192 = pneg %p99
      %p193 = pneg %p96
      %p194 = pneg %p127
      %p195 = pneg %p124
      %p196 = scmp.lt.s32.totalorder %s18, 1
      %s197 = scalar_select %p196, %s18, 1
      %p198 = scmp.lt.s32.totalorder %s19, 0
      %s199 = scalar_select %p198, %s19, 0
      %s200 = smul.addr %s199, 3
      %s201 = smul.addr %s197, 3
      %s202 = sadd.s32 %s200, %s201
      %s203 = smul.addr %s202, 8
      %s204 = scalar_lea.vmem %s3, %s203
      %p205 = scmp.lt.s32.totalorder %s18, 1
      %s206 = scalar_select %p205, %s18, 1
      %s207 = smul.addr %s206, 4
      %s208 = smul.addr %s207, 8
      %s209 = scalar_lea.vmem %s0, %s208
      %p210 = scmp.lt.s32.totalorder %s19, 0
      %s211 = scalar_select %p210, %s19, 0
      %s212 = smul.addr %s211, 8
      %s213 = scalar_lea.vmem %s1, %s212
      %p214 = scmp.lt.s32.totalorder %s19, 0
      %s215 = scalar_select %p214, %s19, 0
      %s216 = smul.addr %s215, 8
      %s217 = scalar_lea.vmem %s2, %s216
      %p218 = scmp.lt.s32.totalorder %s18, 1
      %s219 = scalar_select %p218, %s18, 1
      %p220 = scmp.lt.s32.totalorder %s19, 0
      %s221 = scalar_select %p220, %s19, 0
      %s222 = smul.addr %s221, 3
      %s223 = smul.addr %s219, 3
      %s224 = sadd.s32 %s222, %s223
      %s225 = smul.addr %s224, 8
      %s226 = scalar_lea.vmem %s3, %s225
      %v227 = vld [vmem:[%s209] sm:$0xff]
      %v228 = vld [vmem:[%s209 + $0x8] sm:$0xff]
      %v229 = vld [vmem:[%s209 + $0x10] sm:$0xff]
      %v230 = vld [vmem:[%s209 + $0x18] sm:$0xff]
      %231 = vst [vmem:[#allocation3] sm:$0xff] %v227
      %232 = vst [vmem:[#allocation3 + $0x8] sm:$0xff] %v228
      %233 = vst [vmem:[#allocation3 + $0x10] sm:$0xff] %v229
      %vm234 = vcmask 293888
      %235 = vst.msk [vmem:[#allocation3 + $0x18] sm:$0xff] %vm234, %v230
      %v236 = vld [vmem:[%s209] sm:$0xff]
      %v237 = vld [vmem:[%s209 + $0x8] sm:$0xff]
      %v238 = vld [vmem:[%s209 + $0x10] sm:$0xff]
      %v239 = vld [vmem:[%s209 + $0x18] sm:$0xff]
      %244 = vrot.lane.b32.xlu0 %v236, 127
      %v245 = vpop.permute.xlu0 %244
      %246 = vrot.lane.b32.xlu0 %v237, 127
      %v247 = vpop.permute.xlu0 %246
      %248 = vrot.lane.b32.xlu0 %v238, 127
      %v249 = vpop.permute.xlu0 %248
      %250 = vrot.lane.b32.xlu0 %v239, 127
      %v251 = vpop.permute.xlu0 %250
      %vm252 = vcmask 1039360
      %v253 = vsel %vm252, %v245, %v247
      %v254 = vsel %vm252, %v247, %v249
      %v255 = vsel %vm252, %v249, %v251
      %260 = vst [vmem:[#allocation3 + $0x20] sm:$0xff] %v253
      %261 = vst [vmem:[#allocation3 + $0x28] sm:$0xff] %v254
      %262 = vst [vmem:[#allocation3 + $0x30] sm:$0xff] %v255
      %263 = vst.msk [vmem:[#allocation3 + $0x38] sm:$0xff] %vm234, %v251
      %v264 = vld [vmem:[%s209] sm:$0xff]
      %v265 = vld [vmem:[%s209 + $0x8] sm:$0xff]
      %v266 = vld [vmem:[%s209 + $0x10] sm:$0xff]
      %v267 = vld [vmem:[%s209 + $0x18] sm:$0xff]
      %272 = vrot.lane.b32.xlu0 %v264, 126
      %v273 = vpop.permute.xlu0 %272
      %274 = vrot.lane.b32.xlu0 %v265, 126
      %v275 = vpop.permute.xlu0 %274
      %276 = vrot.lane.b32.xlu0 %v266, 126
      %v277 = vpop.permute.xlu0 %276
      %278 = vrot.lane.b32.xlu0 %v267, 126
      %v279 = vpop.permute.xlu0 %278
      %vm280 = vcmask 1031168
      %v281 = vsel %vm280, %v273, %v275
      %v282 = vsel %vm280, %v275, %v277
      %v283 = vsel %vm280, %v277, %v279
      %288 = vst [vmem:[#allocation3 + $0x40] sm:$0xff] %v281
      %289 = vst [vmem:[#allocation3 + $0x48] sm:$0xff] %v282
      %290 = vst [vmem:[#allocation3 + $0x50] sm:$0xff] %v283
      %291 = vst.msk [vmem:[#allocation3 + $0x58] sm:$0xff] %vm234, %v279
      %v292 = vld [vmem:[%s213] sm:$0xff]
      %v293 = vld [vmem:[#allocation3] sm:$0xff]
      %v294 = vld [vmem:[#allocation3 + $0x8] sm:$0xff]
      %v295 = vld [vmem:[#allocation3 + $0x10] sm:$0xff]
      %v296 = vld [vmem:[#allocation3 + $0x20] sm:$0xff]
      %v297 = vld [vmem:[#allocation3 + $0x28] sm:$0xff]
      %v298 = vld [vmem:[#allocation3 + $0x30] sm:$0xff]
      %v299 = vld [vmem:[#allocation3 + $0x40] sm:$0xff]
      %v300 = vld [vmem:[#allocation3 + $0x48] sm:$0xff]
      %v301 = vld [vmem:[#allocation3 + $0x50] sm:$0xff]
      %vm302 = vcmask 195584
      %v304 = vsel %vm302, %v292, 0
      %306 = vmatpush.msra.mxu0 0.0
      %307 = vmatpush.msra.mxu0 0.0
      %308 = vmatpush.msra.mxu0 0.0
      %309 = vmatpush.msra.mxu0 0.0
      %310 = vmatpush.msra.mxu0 0.0
      %311 = vmatpush.msra.mxu0 0.0
      %312 = vmatpush.msra.mxu0 0.0
      %313 = vmatpush.msra.mxu0 0.0
      %314 = vmatpush.msra.mxu0 0.0
      %315 = vmatpush.msra.mxu0 0.0
      %316 = vmatpush.msra.mxu0 0.0
      %317 = vmatpush.msra.mxu0 0.0
      %318 = vmatpush.msra.mxu0 0.0
      %319 = vmatpush.msra.mxu0 %v299
      %320 = vmatpush.msra.mxu0 %v296
      %321 = vmatpush.msra.mxu0 %v293
      %322 = vmatmul.f32.gmra.mxu0 %v304
      %v323 = vpop.f32.mrf.mxu0
      %v324 = vadd.f32 0.0, %v323
      %325 = vdwg.mxu0
      %326 = vmatpush.msra.mxu0 0.0
      %327 = vmatpush.msra.mxu0 0.0
      %328 = vmatpush.msra.mxu0 0.0
      %329 = vmatpush.msra.mxu0 0.0
      %330 = vmatpush.msra.mxu0 0.0
      %331 = vmatpush.msra.mxu0 0.0
      %332 = vmatpush.msra.mxu0 0.0
      %333 = vmatpush.msra.mxu0 0.0
      %334 = vmatpush.msra.mxu0 0.0
      %335 = vmatpush.msra.mxu0 0.0
      %336 = vmatpush.msra.mxu0 0.0
      %337 = vmatpush.msra.mxu0 0.0
      %338 = vmatpush.msra.mxu0 0.0
      %339 = vmatpush.msra.mxu0 %v300
      %340 = vmatpush.msra.mxu0 %v297
      %341 = vmatpush.msra.mxu0 %v294
      %342 = vmatmul.f32.gmra.mxu0 %v304
      %v343 = vpop.f32.mrf.mxu0
      %v344 = vadd.f32 0.0, %v343
      %345 = vdwg.mxu0
      %346 = vmatpush.msra.mxu0 0.0
      %347 = vmatpush.msra.mxu0 0.0
      %348 = vmatpush.msra.mxu0 0.0
      %349 = vmatpush.msra.mxu0 0.0
      %350 = vmatpush.msra.mxu0 0.0
      %351 = vmatpush.msra.mxu0 0.0
      %352 = vmatpush.msra.mxu0 0.0
      %353 = vmatpush.msra.mxu0 0.0
      %354 = vmatpush.msra.mxu0 0.0
      %355 = vmatpush.msra.mxu0 0.0
      %356 = vmatpush.msra.mxu0 0.0
      %357 = vmatpush.msra.mxu0 0.0
      %358 = vmatpush.msra.mxu0 0.0
      %359 = vmatpush.msra.mxu0 %v301
      %360 = vmatpush.msra.mxu0 %v298
      %361 = vmatpush.msra.mxu0 %v295
      %362 = vmatmul.f32.gmra.mxu0 %v304
      %v363 = vpop.f32.mrf.mxu0
      %v364 = vadd.f32 0.0, %v363
      %365 = vdwg.mxu0
      %366 = vst [vmem:[#allocation2] sm:$0xff] %v324
      %367 = vst [vmem:[#allocation2 + $0x8] sm:$0xff] %v344
      %368 = vst [vmem:[#allocation2 + $0x10] sm:$0xff] %v364
      %s369 = scalar_lea.vmem %s213, 8
      %v370 = vld [vmem:[%s369] sm:$0xff]
      %v371 = vld [vmem:[#allocation3] sm:$0xff]
      %v372 = vld [vmem:[#allocation3 + $0x8] sm:$0xff]
      %v373 = vld [vmem:[#allocation3 + $0x10] sm:$0xff]
      %v374 = vld [vmem:[#allocation3 + $0x18] sm:$0xff]
      %v375 = vld [vmem:[#allocation3 + $0x20] sm:$0xff]
      %v376 = vld [vmem:[#allocation3 + $0x28] sm:$0xff]
      %v377 = vld [vmem:[#allocation3 + $0x30] sm:$0xff]
      %v378 = vld [vmem:[#allocation3 + $0x38] sm:$0xff]
      %v379 = vld [vmem:[#allocation3 + $0x40] sm:$0xff]
      %v380 = vld [vmem:[#allocation3 + $0x48] sm:$0xff]
      %v381 = vld [vmem:[#allocation3 + $0x50] sm:$0xff]
      %v382 = vld [vmem:[#allocation3 + $0x58] sm:$0xff]
      %395 = vrot.lane.b32.xlu0 %v371, 110
      %v396 = vpop.permute.xlu0 %395
      %397 = vrot.lane.b32.xlu0 %v372, 110
      %v398 = vpop.permute.xlu0 %397
      %399 = vrot.lane.b32.xlu0 %v373, 110
      %v400 = vpop.permute.xlu0 %399
      %401 = vrot.lane.b32.xlu0 %v374, 110
      %v402 = vpop.permute.xlu0 %401
      %403 = vrot.lane.b32.xlu0 %v375, 110
      %v404 = vpop.permute.xlu0 %403
      %405 = vrot.lane.b32.xlu0 %v376, 110
      %v406 = vpop.permute.xlu0 %405
      %407 = vrot.lane.b32.xlu0 %v377, 110
      %v408 = vpop.permute.xlu0 %407
      %409 = vrot.lane.b32.xlu0 %v378, 110
      %v410 = vpop.permute.xlu0 %409
      %411 = vrot.lane.b32.xlu0 %v379, 110
      %v412 = vpop.permute.xlu0 %411
      %413 = vrot.lane.b32.xlu0 %v380, 110
      %v414 = vpop.permute.xlu0 %413
      %415 = vrot.lane.b32.xlu0 %v381, 110
      %v416 = vpop.permute.xlu0 %415
      %417 = vrot.lane.b32.xlu0 %v382, 110
      %v418 = vpop.permute.xlu0 %417
      %vm419 = vcmask 900096
      %v420 = vsel %vm419, %v396, %v398
      %v421 = vsel %vm419, %v398, %v400
      %v422 = vsel %vm419, %v400, %v402
      %v423 = vsel %vm419, %v404, %v406
      %v424 = vsel %vm419, %v406, %v408
      %v425 = vsel %vm419, %v408, %v410
      %v426 = vsel %vm419, %v412, %v414
      %v427 = vsel %vm419, %v414, %v416
      %v428 = vsel %vm419, %v416, %v418
      %v439 = vsel %vm302, %v370, 0
      %441 = vmatpush.msra.mxu0 0.0
      %442 = vmatpush.msra.mxu0 0.0
      %443 = vmatpush.msra.mxu0 0.0
      %444 = vmatpush.msra.mxu0 0.0
      %445 = vmatpush.msra.mxu0 0.0
      %446 = vmatpush.msra.mxu0 0.0
      %447 = vmatpush.msra.mxu0 0.0
      %448 = vmatpush.msra.mxu0 0.0
      %449 = vmatpush.msra.mxu0 0.0
      %450 = vmatpush.msra.mxu0 0.0
      %451 = vmatpush.msra.mxu0 0.0
      %452 = vmatpush.msra.mxu0 0.0
      %453 = vmatpush.msra.mxu0 0.0
      %454 = vmatpush.msra.mxu0 %v426
      %455 = vmatpush.msra.mxu0 %v423
      %456 = vmatpush.msra.mxu0 %v420
      %457 = vmatmul.f32.gmra.mxu0 %v439
      %v458 = vpop.f32.mrf.mxu0
      %v459 = vadd.f32 0.0, %v458
      %460 = vdwg.mxu0
      %461 = vmatpush.msra.mxu0 0.0
      %462 = vmatpush.msra.mxu0 0.0
      %463 = vmatpush.msra.mxu0 0.0
      %464 = vmatpush.msra.mxu0 0.0
      %465 = vmatpush.msra.mxu0 0.0
      %466 = vmatpush.msra.mxu0 0.0
      %467 = vmatpush.msra.mxu0 0.0
      %468 = vmatpush.msra.mxu0 0.0
      %469 = vmatpush.msra.mxu0 0.0
      %470 = vmatpush.msra.mxu0 0.0
      %471 = vmatpush.msra.mxu0 0.0
      %472 = vmatpush.msra.mxu0 0.0
      %473 = vmatpush.msra.mxu0 0.0
      %474 = vmatpush.msra.mxu0 %v427
      %475 = vmatpush.msra.mxu0 %v424
      %476 = vmatpush.msra.mxu0 %v421
      %477 = vmatmul.f32.gmra.mxu0 %v439
      %v478 = vpop.f32.mrf.mxu0
      %v479 = vadd.f32 0.0, %v478
      %480 = vdwg.mxu0
      %481 = vmatpush.msra.mxu0 0.0
      %482 = vmatpush.msra.mxu0 0.0
      %483 = vmatpush.msra.mxu0 0.0
      %484 = vmatpush.msra.mxu0 0.0
      %485 = vmatpush.msra.mxu0 0.0
      %486 = vmatpush.msra.mxu0 0.0
      %487 = vmatpush.msra.mxu0 0.0
      %488 = vmatpush.msra.mxu0 0.0
      %489 = vmatpush.msra.mxu0 0.0
      %490 = vmatpush.msra.mxu0 0.0
      %491 = vmatpush.msra.mxu0 0.0
      %492 = vmatpush.msra.mxu0 0.0
      %493 = vmatpush.msra.mxu0 0.0
      %494 = vmatpush.msra.mxu0 %v428
      %495 = vmatpush.msra.mxu0 %v425
      %496 = vmatpush.msra.mxu0 %v422
      %497 = vmatmul.f32.gmra.mxu0 %v439
      %v498 = vpop.f32.mrf.mxu0
      %v499 = vadd.f32 0.0, %v498
      %500 = vdwg.mxu0
      %v501 = vld [vmem:[#allocation2] sm:$0xff]
      %v502 = vld [vmem:[#allocation2 + $0x8] sm:$0xff]
      %v503 = vld [vmem:[#allocation2 + $0x10] sm:$0xff]
      %v504 = vadd.f32 %v501, %v459
      %v505 = vadd.f32 %v502, %v479
      %v506 = vadd.f32 %v503, %v499
      %507 = vst [vmem:[#allocation2] sm:$0xff] %v504
      %508 = vst [vmem:[#allocation2 + $0x8] sm:$0xff] %v505
      %509 = vst [vmem:[#allocation2 + $0x10] sm:$0xff] %v506
      %s510 = scalar_lea.vmem %s213, 16
      %v511 = vld [vmem:[%s510] sm:$0xff]
      %v512 = vld [vmem:[#allocation3] sm:$0xff]
      %v513 = vld [vmem:[#allocation3 + $0x8] sm:$0xff]
      %v514 = vld [vmem:[#allocation3 + $0x10] sm:$0xff]
      %v515 = vld [vmem:[#allocation3 + $0x18] sm:$0xff]
      %v516 = vld [vmem:[#allocation3 + $0x20] sm:$0xff]
      %v517 = vld [vmem:[#allocation3 + $0x28] sm:$0xff]
      %v518 = vld [vmem:[#allocation3 + $0x30] sm:$0xff]
      %v519 = vld [vmem:[#allocation3 + $0x38] sm:$0xff]
      %v520 = vld [vmem:[#allocation3 + $0x40] sm:$0xff]
      %v521 = vld [vmem:[#allocation3 + $0x48] sm:$0xff]
      %v522 = vld [vmem:[#allocation3 + $0x50] sm:$0xff]
      %v523 = vld [vmem:[#allocation3 + $0x58] sm:$0xff]
      %536 = vrot.lane.b32.xlu0 %v512, 92
      %v537 = vpop.permute.xlu0 %536
      %538 = vrot.lane.b32.xlu0 %v513, 92
      %v539 = vpop.permute.xlu0 %538
      %540 = vrot.lane.b32.xlu0 %v514, 92
      %v541 = vpop.permute.xlu0 %540
      %542 = vrot.lane.b32.xlu0 %v515, 92
      %v543 = vpop.permute.xlu0 %542
      %544 = vrot.lane.b32.xlu0 %v516, 92
      %v545 = vpop.permute.xlu0 %544
      %546 = vrot.lane.b32.xlu0 %v517, 92
      %v547 = vpop.permute.xlu0 %546
      %548 = vrot.lane.b32.xlu0 %v518, 92
      %v549 = vpop.permute.xlu0 %548
      %550 = vrot.lane.b32.xlu0 %v519, 92
      %v551 = vpop.permute.xlu0 %550
      %552 = vrot.lane.b32.xlu0 %v520, 92
      %v553 = vpop.permute.xlu0 %552
      %554 = vrot.lane.b32.xlu0 %v521, 92
      %v555 = vpop.permute.xlu0 %554
      %556 = vrot.lane.b32.xlu0 %v522, 92
      %v557 = vpop.permute.xlu0 %556
      %558 = vrot.lane.b32.xlu0 %v523, 92
      %v559 = vpop.permute.xlu0 %558
      %vm560 = vcmask 752640
      %v561 = vsel %vm560, %v537, %v539
      %v562 = vsel %vm560, %v539, %v541
      %v563 = vsel %vm560, %v541, %v543
      %v564 = vsel %vm560, %v545, %v547
      %v565 = vsel %vm560, %v547, %v549
      %v566 = vsel %vm560, %v549, %v551
      %v567 = vsel %vm560, %v553, %v555
      %v568 = vsel %vm560, %v555, %v557
      %v569 = vsel %vm560, %v557, %v559
      %v580 = vsel %vm302, %v511, 0
      %582 = vmatpush.msra.mxu0 0.0
      %583 = vmatpush.msra.mxu0 0.0
      %584 = vmatpush.msra.mxu0 0.0
      %585 = vmatpush.msra.mxu0 0.0
      %586 = vmatpush.msra.mxu0 0.0
      %587 = vmatpush.msra.mxu0 0.0
      %588 = vmatpush.msra.mxu0 0.0
      %589 = vmatpush.msra.mxu0 0.0
      %590 = vmatpush.msra.mxu0 0.0
      %591 = vmatpush.msra.mxu0 0.0
      %592 = vmatpush.msra.mxu0 0.0
      %593 = vmatpush.msra.mxu0 0.0
      %594 = vmatpush.msra.mxu0 0.0
      %595 = vmatpush.msra.mxu0 %v567
      %596 = vmatpush.msra.mxu0 %v564
      %597 = vmatpush.msra.mxu0 %v561
      %598 = vmatmul.f32.gmra.mxu0 %v580
      %v599 = vpop.f32.mrf.mxu0
      %v600 = vadd.f32 0.0, %v599
      %601 = vdwg.mxu0
      %602 = vmatpush.msra.mxu0 0.0
      %603 = vmatpush.msra.mxu0 0.0
      %604 = vmatpush.msra.mxu0 0.0
      %605 = vmatpush.msra.mxu0 0.0
      %606 = vmatpush.msra.mxu0 0.0
      %607 = vmatpush.msra.mxu0 0.0
      %608 = vmatpush.msra.mxu0 0.0
      %609 = vmatpush.msra.mxu0 0.0
      %610 = vmatpush.msra.mxu0 0.0
      %611 = vmatpush.msra.mxu0 0.0
      %612 = vmatpush.msra.mxu0 0.0
      %613 = vmatpush.msra.mxu0 0.0
      %614 = vmatpush.msra.mxu0 0.0
      %615 = vmatpush.msra.mxu0 %v568
      %616 = vmatpush.msra.mxu0 %v565
      %617 = vmatpush.msra.mxu0 %v562
      %618 = vmatmul.f32.gmra.mxu0 %v580
      %v619 = vpop.f32.mrf.mxu0
      %v620 = vadd.f32 0.0, %v619
      %621 = vdwg.mxu0
      %622 = vmatpush.msra.mxu0 0.0
      %623 = vmatpush.msra.mxu0 0.0
      %624 = vmatpush.msra.mxu0 0.0
      %625 = vmatpush.msra.mxu0 0.0
      %626 = vmatpush.msra.mxu0 0.0
      %627 = vmatpush.msra.mxu0 0.0
      %628 = vmatpush.msra.mxu0 0.0
      %629 = vmatpush.msra.mxu0 0.0
      %630 = vmatpush.msra.mxu0 0.0
      %631 = vmatpush.msra.mxu0 0.0
      %632 = vmatpush.msra.mxu0 0.0
      %633 = vmatpush.msra.mxu0 0.0
      %634 = vmatpush.msra.mxu0 0.0
      %635 = vmatpush.msra.mxu0 %v569
      %636 = vmatpush.msra.mxu0 %v566
      %637 = vmatpush.msra.mxu0 %v563
      %638 = vmatmul.f32.gmra.mxu0 %v580
      %v639 = vpop.f32.mrf.mxu0
      %v640 = vadd.f32 0.0, %v639
      %641 = vdwg.mxu0
      %v642 = vld [vmem:[#allocation2] sm:$0xff]
      %v643 = vld [vmem:[#allocation2 + $0x8] sm:$0xff]
      %v644 = vld [vmem:[#allocation2 + $0x10] sm:$0xff]
      %v645 = vadd.f32 %v642, %v600
      %v646 = vadd.f32 %v643, %v620
      %v647 = vadd.f32 %v644, %v640
      %648 = vst [vmem:[#allocation2] sm:$0xff] %v645
      %649 = vst [vmem:[#allocation2 + $0x8] sm:$0xff] %v646
      %650 = vst [vmem:[#allocation2 + $0x10] sm:$0xff] %v647
      %v651 = vld [vmem:[#allocation2] sm:$0xff]
      %v652 = vld [vmem:[#allocation2 + $0x8] sm:$0xff]
      %v653 = vld [vmem:[#allocation2 + $0x10] sm:$0xff]
      %v654 = vld [vmem:[%s217] sm:$0xff]
      %656 = vset.pattern.permute.xlu0 0
      %657 = vperm.xlu0 %656, %v654
      %v658 = vpop.permute.xlu0 %657
      %v660 = vadd.f32 %v651, %v658
      %v661 = vadd.f32 %v652, %v658
      %v662 = vadd.f32 %v653, %v658
      %v663 = vadd.f32 %v660, 3.0
      %v664 = vadd.f32 %v661, 3.0
      %v665 = vadd.f32 %v662, 3.0
      %v666 = vmax.f32 %v663, 0.0
      %v667 = vmax.f32 %v664, 0.0
      %v668 = vmax.f32 %v665, 0.0
      %v669 = vmin.f32 %v666, 6.0
      %v670 = vmin.f32 %v667, 6.0
      %v671 = vmin.f32 %v668, 6.0
      %v672 = vmul.f32 %v660, %v669
      %v673 = vmul.f32 %v661, %v670
      %v674 = vmul.f32 %v662, %v671
      %v675 = vmul.f32 %v672, 0.16666667
      %v676 = vmul.f32 %v673, 0.16666667
      %v677 = vmul.f32 %v674, 0.16666667
      %678 = vst [vmem:[%s226] sm:$0xff] %v675
      %679 = vst [vmem:[%s226 + $0x8] sm:$0xff] %v676
      %680 = vst [vmem:[%s226 + $0x10] sm:$0xff] %v677
      %p681 = scmp.lt.s32.totalorder %s18, 1
      %s682 = scalar_select %p681, %s18, 1
      %p683 = scmp.lt.s32.totalorder %s19, 0
      %s684 = scalar_select %p683, %s19, 0
      %s685 = smul.addr %s684, 3
      %s686 = smul.addr %s682, 3
      %s687 = sadd.s32 %s685, %s686
      %s688 = smul.addr %s687, 8
      %s689 = scalar_lea.vmem %s3, %s688
      // Predicated region
      $region33: #{conv3x3_bn_hswish.1} parent=31 // pred_check
        %p690 = pneg %p124
      $region34: #{conv3x3_bn_hswish.1} parent=31 // pred_check_branch
        %692 = sbr.rel (%p690) target = $region36
      $region35: #{conv3x3_bn_hswish.1} parent=31 // pred_region
        _
      $region36: #{conv3x3_bn_hswish.1} parent=31 // pred_fallthru
        _
    $region32: #{conv3x3_bn_hswish.1} parent=5 // pred_fallthru
      _
    %p693 = scmp.le.s32.totalorder 2, %s9
    // Predicated region
    $region37: #{conv3x3_bn_hswish.1} parent=5 // pred_check
      %p694 = pneg %p693
    $region38: #{conv3x3_bn_hswish.1} parent=5 // pred_check_branch
      %696 = sbr.rel (%p694) target = $region40
    $region39: #{conv3x3_bn_hswish.1} parent=5 // pred_region
      %s697 = ssub.s32 %s9, 2
      // Predicated region
      $region41: #{conv3x3_bn_hswish.1} parent=39 // pred_check
        %p698 = pneg %p130
      $region42: #{conv3x3_bn_hswish.1} parent=39 // pred_check_branch
        %700 = sbr.rel (%p698) target = $region44
      $region43: #{conv3x3_bn_hswish.1} parent=39 // pred_region
        %p701 = scmp.lt.s32.totalorder %s20, 1
        %s702 = scalar_select %p701, %s20, 1
        %p703 = scmp.lt.s32.totalorder %s21, 0
        %s704 = scalar_select %p703, %s21, 0
        %s705 = smul.addr %s704, 3
        %s706 = smul.addr %s702, 3
        %s707 = sadd.s32 %s705, %s706
        %s708 = smul.addr %s707, 8
        %s709 = scalar_lea.vmem %s3, %s708
      $region44: #{conv3x3_bn_hswish.1} parent=39 // pred_fallthru
        _
    $region40: #{conv3x3_bn_hswish.1} parent=5 // pred_fallthru
      _
  $region6: #{conv3x3_bn_hswish.1} parent=0 // loop_footer
    %s13 = sadd.s32 1, %s9
  $region7: #{conv3x3_bn_hswish.1} parent=0 // loop_footer_branch
    %8 = sbr.rel target = $region3
  $region8: #{conv3x3_bn_hswish.1} parent=0 // loop_exit
    _

</llo_original>
